<compile_context>
chip_gen: v7x
topology: tpu7x:2x2x1
jax: 0.10.0
libtpu: 0.0.40
codegen_flags: <defaults>
</compile_context>

<pallas_src>
import jax
import jax.numpy as jnp
from jax import lax
from jax.experimental import pallas as pl
from jax.experimental.pallas import tpu as pltpu


def make_attention_kernel(scale, n_valid, tile_k, needs_kv_mask):
    def kernel(xq_ref, k_ref, v_ref, wq_ref, wo_ref, o_ref,
               q_scr, m_scr, l_scr, acc_scr):
        # xq_ref: (1, Cq, tq) bf16      k_ref/v_ref: (1, T, tk) bf16
        # wq_ref: (Cq, T) bf16          wo_ref: (T, O) bf16
        # o_ref:  (1, O, tq) f32
        # q_scr: (T, tq) bf16   acc_scr: (T, tq) f32   m_scr/l_scr: (1, tq) f32
        ki = pl.program_id(2)
        nk = pl.num_programs(2)

        @pl.when(ki == 0)
        def _init():
            # query projection (1x1 conv): q = Wq^T @ x -> (T, tq); softmax
            # scale folded in here; stored directly as bf16 for the score dot.
            xq = xq_ref[0]                                        # (Cq, tq)
            q = lax.dot_general(wq_ref[...], xq,
                                (((0,), (0,)), ((), ())),
                                preferred_element_type=jnp.float32)
            q_scr[...] = (q * scale).astype(jnp.bfloat16)
            m_scr[...] = jnp.full_like(m_scr, -jnp.inf)
            l_scr[...] = jnp.zeros_like(l_scr)
            acc_scr[...] = jnp.zeros_like(acc_scr)

        k_t = k_ref[0]                                            # (T, tk) bf16
        v_t = v_ref[0]                                            # (T, tk) bf16

        # scores s[kv, q] = k . q  (contract T, no explicit transpose) -> (tk, tq)
        s = lax.dot_general(k_t, q_scr[...],
                            (((0,), (0,)), ((), ())),
                            preferred_element_type=jnp.float32)

        if needs_kv_mask:
            # mask padded KV rows (only compiled in when N % tile_k != 0)
            kv_ids = lax.broadcasted_iota(jnp.int32, s.shape, 0) + ki * tile_k
            s = jnp.where(kv_ids < n_valid, s, -jnp.inf)

        # online softmax over the KV axis (axis 0); m/l/acc carried in f32
        m_prev = m_scr[...]                                       # (1, tq)
        m_new = jnp.maximum(m_prev, jnp.max(s, axis=0, keepdims=True))
        alpha = jnp.exp(m_prev - m_new)                           # (1, tq)
        p = jnp.exp(s - m_new)                                    # (tk, tq)
        l_scr[...] = alpha * l_scr[...] + jnp.sum(p, axis=0, keepdims=True)
        acc_scr[...] = alpha * acc_scr[...] + lax.dot_general(
            v_t, p.astype(jnp.bfloat16),
            (((1,), (0,)), ((), ())),
            preferred_element_type=jnp.float32)                   # (T, tq)
        m_scr[...] = m_new

        @pl.when(ki == nk - 1)
        def _finalize():
            inv_l = pl.reciprocal(l_scr[...], approx=True)        # (1, tq)
            ctx = (acc_scr[...] * inv_l).astype(jnp.bfloat16)     # (T, tq)
            # output projection (1x1 conv): out = Wo^T @ ctx -> (O, tq)
            out = lax.dot_general(wo_ref[...], ctx,
                                  (((0,), (0,)), ((), ())),
                                  preferred_element_type=jnp.float32)
            o_ref[0] = out.astype(o_ref.dtype)

    return kernel


def _round_up(n, m):
    return ((n + m - 1) // m) * m


def _tpu_memory_plan():
    """(vmem_limit_bytes, max_tile) chosen per TPU generation."""
    try:
        cap = int(pltpu.get_tpu_info().vmem_capacity_bytes)
    except Exception:
        cap = 64 * 1024 * 1024                 # conservative (v7x per-core VMEM)
    vmem_limit = min((cap * 3) // 4, 96 * 1024 * 1024)
    max_tile = 1024 if cap >= 100 * 1024 * 1024 else 512
    return vmem_limit, max_tile


def _pick_tile(n, cap):
    for t in (1024, 512, 256, 128):
        if t <= cap and n % t == 0:
            return t
    # no aligned divisor: lane-aligned tile + padding (+ in-kernel KV mask)
    return min(cap, _round_up(n, 128))


def self_attention_block(query_feats, key_feats, params, transform_channels,
                         tile_q=None, tile_k=None):
    """query_feats/key_feats: NCHW float32.  Returns NCHW (B, O, H, W) float32."""
    B, Cq, H, W = query_feats.shape
    _, Ck, Hk, Wk = key_feats.shape
    assert (H, W) == (Hk, Wk)
    N = H * W
    wq, wk, wv, wo = params                 # (Cq,T), (Ck,T), (Ck,T), (T,O)
    T = wq.shape[1]
    O = wo.shape[1]
    assert T == transform_channels

    vmem_limit, max_tile = _tpu_memory_plan()
    tq = tile_q or _pick_tile(N, max_tile)
    tk = tile_k or _pick_tile(N, max_tile)
    Nq = _round_up(N, tq)
    Nk = _round_up(N, tk)
    needs_kv_mask = (Nk != N)

    scale = float(transform_channels) ** (-0.5)

    # NCHW -> (B, C, N): straight reshape, N stays lane-major; pad to tiles.
    xq = query_feats.reshape(B, Cq, N)
    xk = key_feats.reshape(B, Ck, N)
    if Nq != N:
        xq = jnp.pad(xq, ((0, 0), (0, 0), (0, Nq - N)))
    if Nk != N:
        xk = jnp.pad(xk, ((0, 0), (0, 0), (0, Nk - N)))
    xq = xq.astype(jnp.bfloat16)

    # K/V 1x1-conv projections hoisted out of the attention grid: one fused
    # bf16 XLA matmul -> (B, 2T, Nk), computed once per batch element.
    wkv = jnp.concatenate([wk, wv], axis=1).astype(jnp.bfloat16)
    kvp = jnp.einsum('ct,bcn->btn', wkv, xk.astype(jnp.bfloat16),
                     preferred_element_type=jnp.float32).astype(jnp.bfloat16)
    k_proj = kvp[:, :T, :]                  # (B, T, Nk) bf16
    v_proj = kvp[:, T:, :]                  # (B, T, Nk) bf16

    wq_b = wq.astype(jnp.bfloat16)
    wo_b = wo.astype(jnp.bfloat16)

    out = pl.pallas_call(
        make_attention_kernel(scale, N, tk, needs_kv_mask),
        out_shape=jax.ShapeDtypeStruct((B, O, Nq), jnp.float32),
        grid_spec=pltpu.PrefetchScalarGridSpec(
            num_scalar_prefetch=0,
            grid=(B, Nq // tq, Nk // tk),        # KV (reduction) axis last
            in_specs=[
                pl.BlockSpec((1, Cq, tq), lambda b, qi, ki: (b, 0, qi)),
                pl.BlockSpec((1, T, tk), lambda b, qi, ki: (b, 0, ki)),
                pl.BlockSpec((1, T, tk), lambda b, qi, ki: (b, 0, ki)),
                pl.BlockSpec((Cq, T), lambda b, qi, ki: (0, 0)),
                pl.BlockSpec((T, O), lambda b, qi, ki: (0, 0)),
            ],
            out_specs=pl.BlockSpec((1, O, tq), lambda b, qi, ki: (b, 0, qi)),
            scratch_shapes=[
                pltpu.VMEM((T, tq), jnp.bfloat16),   # scaled q tile (bf16)
                pltpu.VMEM((1, tq), jnp.float32),    # running max
                pltpu.VMEM((1, tq), jnp.float32),    # running sum
                pltpu.VMEM((T, tq), jnp.float32),    # output accumulator
            ],
        ),
        compiler_params=pltpu.CompilerParams(
            dimension_semantics=("parallel", "parallel", "arbitrary"),
            vmem_limit_bytes=vmem_limit),
    )(xq, k_proj, v_proj, wq_b, wo_b)

    if Nq != N:
        out = out[:, :, :N]
    # (B, O, N) -> (B, O, H, W): free reshape, matches the PyTorch output.
    return out.reshape(B, O, H, W)


def reference_jax(query_feats, key_feats, params, transform_channels):
    B, Cq, H, W = query_feats.shape
    _, Ck, _, _ = key_feats.shape
    N = H * W
    wq, wk, wv, wo = params
    xq = query_feats.reshape(B, Cq, N).transpose(0, 2, 1)
    xk = key_feats.reshape(B, Ck, N).transpose(0, 2, 1)
    q = xq @ wq
    k = xk @ wk
    v = xk @ wv
    sim = jnp.einsum("bnt,bmt->bnm", q, k) * (transform_channels ** -0.5)
    p = jax.nn.softmax(sim, axis=-1)
    ctx = jnp.einsum("bnm,bmt->bnt", p, v)
    out = ctx @ wo
    return out.transpose(0, 2, 1).reshape(B, wo.shape[1], H, W)


if __name__ == "__main__":
    # Small shapes consistent with the module's forward.
    B, C, H, W = 2, 4, 16, 16          # key_in_channels = query_in_channels = 4
    T, O = 32, 4                       # transform_channels = 32, out_channels = 4

    key = jax.random.PRNGKey(0)
    k0, k1, k2, k3, k4, k5, k6, k7 = jax.random.split(key, 8)

    query_feats = jax.random.normal(k0, (B, C, H, W), dtype=jnp.float32)
    key_feats = jax.random.normal(k1, (B, C, H, W), dtype=jnp.float32)

    # Deterministic 1x1-conv weights; stored as (in, out) so projections are
    # x @ W (this is the transpose of torch Conv2d's (out, in, 1, 1) weight).
    wq = jax.random.normal(k2, (C, T), dtype=jnp.float32) * 0.1
    wk = jax.random.normal(k3, (C, T), dtype=jnp.float32) * 0.1
    wv = jax.random.normal(k4, (C, T), dtype=jnp.float32) * 0.1
    wo = jax.random.normal(k5, (T, O), dtype=jnp.float32) * 0.1
    params = (wq, wk, wv, wo)

    # Test 1: tile_q=tile_k=128 -> grid (B, 2, 2): exercises the multi-tile
    # online-softmax accumulation path at N = 256 (divisible, no masking).
    out = self_attention_block(query_feats, key_feats, params, T,
                               tile_q=128, tile_k=128)
    out = jax.block_until_ready(out)
    ref = reference_jax(query_feats, key_feats, params, T)
    assert out.shape == (B, O, H, W)
    # tolerance relaxed for bf16 MXU inputs + approx (EUP) reciprocal
    assert jnp.allclose(out, ref, atol=2e-2, rtol=2e-2), "mismatch vs JAX reference"

    # Test 2: N = 300 (not a multiple of 128) -> padding + masked tail KV tile.
    H2, W2 = 15, 20
    qf2 = jax.random.normal(k6, (B, C, H2, W2), dtype=jnp.float32)
    kf2 = jax.random.normal(k7, (B, C, H2, W2), dtype=jnp.float32)
    out2 = self_attention_block(qf2, kf2, params, T, tile_q=128, tile_k=128)
    out2 = jax.block_until_ready(out2)
    ref2 = reference_jax(qf2, kf2, params, T)
    assert out2.shape == (B, O, H2, W2)
    assert jnp.allclose(out2, ref2, atol=2e-2, rtol=2e-2), "mismatch (padded N)"

    print("KERNEL_OK")
</pallas_src>

<mosaic_0001>
module attributes {stable_mosaic.version = 11 : i64} {
  func.func @kernel(%arg0: i32, %arg1: i32, %arg2: i32, %arg3: memref<1x4x128xbf16, #tpu.memory_space<vmem>>, %arg4: memref<1x32x128xbf16, #tpu.memory_space<vmem>>, %arg5: memref<1x32x128xbf16, #tpu.memory_space<vmem>>, %arg6: memref<4x32xbf16, #tpu.memory_space<vmem>>, %arg7: memref<32x4xbf16, #tpu.memory_space<vmem>>, %arg8: memref<1x4x128xf32, #tpu.memory_space<vmem>>, %arg9: memref<32x128xbf16, #tpu.memory_space<vmem>>, %arg10: memref<1x128xf32, #tpu.memory_space<vmem>>, %arg11: memref<1x128xf32, #tpu.memory_space<vmem>>, %arg12: memref<32x128xf32, #tpu.memory_space<vmem>>) attributes {dimension_semantics = [#tpu.dimension_semantics<parallel>, #tpu.dimension_semantics<parallel>, #tpu.dimension_semantics<arbitrary>], iteration_bounds = array<i64: 2, 2, 2>, scalar_prefetch = 0 : i64, scratch_operands = 4 : i64, tpu.core_type = #tpu.core_type<tc>, window_params = [{transform_indices = @transform_0, window_bounds = array<i64: 1, 4, 128>}, {transform_indices = @transform_1, window_bounds = array<i64: 1, 32, 128>}, {transform_indices = @transform_2, window_bounds = array<i64: 1, 32, 128>}, {pipeline_mode = #tpu.pipeline_mode<synchronous>, transform_indices = @transform_3, window_bounds = array<i64: 4, 32>}, {pipeline_mode = #tpu.pipeline_mode<synchronous>, transform_indices = @transform_4, window_bounds = array<i64: 32, 4>}, {transform_indices = @transform_5, window_bounds = array<i64: 1, 4, 128>}]} {
    %c0_i32 = arith.constant 0 : i32
    %0 = arith.cmpi eq, %arg2, %c0_i32 : i32
    %1 = arith.extui %0 : i1 to i32
    %c0_i32_0 = arith.constant 0 : i32
    %2 = arith.cmpi ne, %1, %c0_i32_0 : i32
    scf.if %2 {
      %c0_24 = arith.constant 0 : index
      %c0_25 = arith.constant 0 : index
      %c0_26 = arith.constant 0 : index
      %35 = vector.load %arg3[%c0_24, %c0_25, %c0_26] : memref<1x4x128xbf16, #tpu.memory_space<vmem>>, vector<1x4x128xbf16>
      %36 = vector.shape_cast %35 : vector<1x4x128xbf16> to vector<4x128xbf16>
      %c0_27 = arith.constant 0 : index
      %c0_28 = arith.constant 0 : index
      %37 = vector.load %arg6[%c0_27, %c0_28] : memref<4x32xbf16, #tpu.memory_space<vmem>>, vector<4x32xbf16>
      %cst_29 = arith.constant dense<0.000000e+00> : vector<32x128xf32>
      %38 = tpu.matmul %37, %36, %cst_29 {dimension_numbers = #tpu.dot_dimension_numbers<[0], [0], [1], [1], [0, 1, 1, 1], [], []>} : vector<4x32xbf16>, vector<4x128xbf16>, vector<32x128xf32> -> vector<32x128xf32>
      %cst_30 = arith.constant 0.176776692 : f32
      %39 = vector.broadcast %cst_30 : f32 to vector<32x128xf32>
      %40 = arith.mulf %38, %39 : vector<32x128xf32>
      %41 = arith.truncf %40 : vector<32x128xf32> to vector<32x128xbf16>
      %c0_31 = arith.constant 0 : index
      %c0_32 = arith.constant 0 : index
      %42 = vector.load %arg9[%c0_31, %c0_32] : memref<32x128xbf16, #tpu.memory_space<vmem>>, vector<32x128xbf16>
      tpu.vector_store %arg9[%c0_31, %c0_32], %41 {strides = array<i32>} : memref<32x128xbf16, #tpu.memory_space<vmem>>, vector<32x128xbf16>,
      %cst_33 = arith.constant 0xFF800000 : f32
      %43 = vector.broadcast %cst_33 : f32 to vector<1x128xf32>
      %c0_34 = arith.constant 0 : index
      %c0_35 = arith.constant 0 : index
      %44 = vector.load %arg10[%c0_34, %c0_35] : memref<1x128xf32, #tpu.memory_space<vmem>>, vector<1x128xf32>
      tpu.vector_store %arg10[%c0_34, %c0_35], %43 {strides = array<i32>} : memref<1x128xf32, #tpu.memory_space<vmem>>, vector<1x128xf32>,
      %cst_36 = arith.constant 0.000000e+00 : f32
      %45 = vector.broadcast %cst_36 : f32 to vector<1x128xf32>
      %c0_37 = arith.constant 0 : index
      %c0_38 = arith.constant 0 : index
      %46 = vector.load %arg11[%c0_37, %c0_38] : memref<1x128xf32, #tpu.memory_space<vmem>>, vector<1x128xf32>
      tpu.vector_store %arg11[%c0_37, %c0_38], %45 {strides = array<i32>} : memref<1x128xf32, #tpu.memory_space<vmem>>, vector<1x128xf32>,
      %cst_39 = arith.constant 0.000000e+00 : f32
      %47 = vector.broadcast %cst_39 : f32 to vector<32x128xf32>
      %c0_40 = arith.constant 0 : index
      %c0_41 = arith.constant 0 : index
      %48 = vector.load %arg12[%c0_40, %c0_41] : memref<32x128xf32, #tpu.memory_space<vmem>>, vector<32x128xf32>
      tpu.vector_store %arg12[%c0_40, %c0_41], %47 {strides = array<i32>} : memref<32x128xf32, #tpu.memory_space<vmem>>, vector<32x128xf32>,
    } else {
    }
    %c0 = arith.constant 0 : index
    %c0_1 = arith.constant 0 : index
    %c0_2 = arith.constant 0 : index
    %3 = vector.load %arg4[%c0, %c0_1, %c0_2] : memref<1x32x128xbf16, #tpu.memory_space<vmem>>, vector<1x32x128xbf16>
    %4 = vector.shape_cast %3 : vector<1x32x128xbf16> to vector<32x128xbf16>
    %c0_3 = arith.constant 0 : index
    %c0_4 = arith.constant 0 : index
    %c0_5 = arith.constant 0 : index
    %5 = vector.load %arg5[%c0_3, %c0_4, %c0_5] : memref<1x32x128xbf16, #tpu.memory_space<vmem>>, vector<1x32x128xbf16>
    %6 = vector.shape_cast %5 : vector<1x32x128xbf16> to vector<32x128xbf16>
    %c0_6 = arith.constant 0 : index
    %c0_7 = arith.constant 0 : index
    %7 = vector.load %arg9[%c0_6, %c0_7] : memref<32x128xbf16, #tpu.memory_space<vmem>>, vector<32x128xbf16>
    %cst = arith.constant dense<0.000000e+00> : vector<128x128xf32>
    %8 = tpu.matmul %4, %7, %cst {dimension_numbers = #tpu.dot_dimension_numbers<[0], [0], [1], [1], [0, 1, 1, 1], [], []>} : vector<32x128xbf16>, vector<32x128xbf16>, vector<128x128xf32> -> vector<128x128xf32>
    %c0_8 = arith.constant 0 : index
    %c0_9 = arith.constant 0 : index
    %9 = vector.load %arg10[%c0_8, %c0_9] : memref<1x128xf32, #tpu.memory_space<vmem>>, vector<1x128xf32>
    %cst_10 = arith.constant dense<0xFF800000> : vector<128xf32>
    %10 = vector.multi_reduction <maximumf>, %8, %cst_10 [0] : vector<128x128xf32> to vector<128xf32>
    %11 = vector.shape_cast %10 : vector<128xf32> to vector<1x128xf32>
    %12 = arith.maximumf %9, %11 : vector<1x128xf32>
    %13 = arith.subf %9, %12 : vector<1x128xf32>
    %14 = math.exp %13 : vector<1x128xf32>
    %15 = vector.broadcast %12 : vector<1x128xf32> to vector<128x128xf32>
    %16 = arith.subf %8, %15 : vector<128x128xf32>
    %17 = math.exp %16 : vector<128x128xf32>
    %c0_11 = arith.constant 0 : index
    %c0_12 = arith.constant 0 : index
    %18 = vector.load %arg11[%c0_11, %c0_12] : memref<1x128xf32, #tpu.memory_space<vmem>>, vector<1x128xf32>
    %19 = arith.mulf %14, %18 : vector<1x128xf32>
    %cst_13 = arith.constant dense<0.000000e+00> : vector<128xf32>
    %20 = vector.multi_reduction <add>, %17, %cst_13 [0] : vector<128x128xf32> to vector<128xf32>
    %21 = vector.shape_cast %20 : vector<128xf32> to vector<1x128xf32>
    %22 = arith.addf %19, %21 : vector<1x128xf32>
    %c0_14 = arith.constant 0 : index
    %c0_15 = arith.constant 0 : index
    %23 = vector.load %arg11[%c0_14, %c0_15] : memref<1x128xf32, #tpu.memory_space<vmem>>, vector<1x128xf32>
    tpu.vector_store %arg11[%c0_14, %c0_15], %22 {strides = array<i32>} : memref<1x128xf32, #tpu.memory_space<vmem>>, vector<1x128xf32>,
    %c0_16 = arith.constant 0 : index
    %c0_17 = arith.constant 0 : index
    %24 = vector.load %arg12[%c0_16, %c0_17] : memref<32x128xf32, #tpu.memory_space<vmem>>, vector<32x128xf32>
    %25 = vector.broadcast %14 : vector<1x128xf32> to vector<32x128xf32>
    %26 = arith.mulf %25, %24 : vector<32x128xf32>
    %27 = arith.truncf %17 : vector<128x128xf32> to vector<128x128xbf16>
    %cst_18 = arith.constant dense<0.000000e+00> : vector<32x128xf32>
    %28 = tpu.matmul %6, %27, %cst_18 {dimension_numbers = #tpu.dot_dimension_numbers<[1], [0], [0], [1], [0, 0, 1, 1], [], []>} : vector<32x128xbf16>, vector<128x128xbf16>, vector<32x128xf32> -> vector<32x128xf32>
    %29 = arith.addf %26, %28 : vector<32x128xf32>
    %c0_19 = arith.constant 0 : index
    %c0_20 = arith.constant 0 : index
    %30 = vector.load %arg12[%c0_19, %c0_20] : memref<32x128xf32, #tpu.memory_space<vmem>>, vector<32x128xf32>
    tpu.vector_store %arg12[%c0_19, %c0_20], %29 {strides = array<i32>} : memref<32x128xf32, #tpu.memory_space<vmem>>, vector<32x128xf32>,
    %c0_21 = arith.constant 0 : index
    %c0_22 = arith.constant 0 : index
    %31 = vector.load %arg10[%c0_21, %c0_22] : memref<1x128xf32, #tpu.memory_space<vmem>>, vector<1x128xf32>
    tpu.vector_store %arg10[%c0_21, %c0_22], %12 {strides = array<i32>} : memref<1x128xf32, #tpu.memory_space<vmem>>, vector<1x128xf32>,
    %c1_i32 = arith.constant 1 : i32
    %32 = arith.cmpi eq, %arg2, %c1_i32 : i32
    %33 = arith.extui %32 : i1 to i32
    %c0_i32_23 = arith.constant 0 : i32
    %34 = arith.cmpi ne, %33, %c0_i32_23 : i32
    scf.if %34 {
      %c0_24 = arith.constant 0 : index
      %c0_25 = arith.constant 0 : index
      %35 = vector.load %arg11[%c0_24, %c0_25] : memref<1x128xf32, #tpu.memory_space<vmem>>, vector<1x128xf32>
      %36 = tpu.reciprocal %35 {approx = true} : vector<1x128xf32> -> vector<1x128xf32>
      %c0_26 = arith.constant 0 : index
      %c0_27 = arith.constant 0 : index
      %37 = vector.load %arg12[%c0_26, %c0_27] : memref<32x128xf32, #tpu.memory_space<vmem>>, vector<32x128xf32>
      %38 = vector.broadcast %36 : vector<1x128xf32> to vector<32x128xf32>
      %39 = arith.mulf %37, %38 : vector<32x128xf32>
      %40 = arith.truncf %39 : vector<32x128xf32> to vector<32x128xbf16>
      %c0_28 = arith.constant 0 : index
      %c0_29 = arith.constant 0 : index
      %41 = vector.load %arg7[%c0_28, %c0_29] : memref<32x4xbf16, #tpu.memory_space<vmem>>, vector<32x4xbf16>
      %cst_30 = arith.constant dense<0.000000e+00> : vector<4x128xf32>
      %42 = tpu.matmul %41, %40, %cst_30 {dimension_numbers = #tpu.dot_dimension_numbers<[0], [0], [1], [1], [0, 1, 1, 1], [], []>} : vector<32x4xbf16>, vector<32x128xbf16>, vector<4x128xf32> -> vector<4x128xf32>
      %c0_31 = arith.constant 0 : index
      %c0_32 = arith.constant 0 : index
      %c0_33 = arith.constant 0 : index
      %43 = vector.load %arg8[%c0_31, %c0_32, %c0_33] : memref<1x4x128xf32, #tpu.memory_space<vmem>>, vector<1x4x128xf32>
      %44 = vector.shape_cast %43 : vector<1x4x128xf32> to vector<4x128xf32>
      %45 = vector.shape_cast %42 : vector<4x128xf32> to vector<1x4x128xf32>
      tpu.vector_store %arg8[%c0_31, %c0_32, %c0_33], %45 {strides = array<i32>} : memref<1x4x128xf32, #tpu.memory_space<vmem>>, vector<1x4x128xf32>,
    } else {
    }
    return
  }
  func.func @transform_0(%arg0: i32, %arg1: i32, %arg2: i32) -> (i32, i32, i32) {
    %c0_i32 = arith.constant 0 : i32
    %c0_i32_0 = arith.constant 0 : i32
    return %arg0, %c0_i32, %arg1 : i32, i32, i32
  }
  func.func @transform_1(%arg0: i32, %arg1: i32, %arg2: i32) -> (i32, i32, i32) {
    %c0_i32 = arith.constant 0 : i32
    %c0_i32_0 = arith.constant 0 : i32
    return %arg0, %c0_i32, %arg2 : i32, i32, i32
  }
  func.func @transform_2(%arg0: i32, %arg1: i32, %arg2: i32) -> (i32, i32, i32) {
    %c0_i32 = arith.constant 0 : i32
    %c0_i32_0 = arith.constant 0 : i32
    return %arg0, %c0_i32, %arg2 : i32, i32, i32
  }
  func.func @transform_3(%arg0: i32, %arg1: i32, %arg2: i32) -> (i32, i32) {
    %c0_i32 = arith.constant 0 : i32
    %c0_i32_0 = arith.constant 0 : i32
    %c0_i32_1 = arith.constant 0 : i32
    return %c0_i32, %c0_i32_0 : i32, i32
  }
  func.func @transform_4(%arg0: i32, %arg1: i32, %arg2: i32) -> (i32, i32) {
    %c0_i32 = arith.constant 0 : i32
    %c0_i32_0 = arith.constant 0 : i32
    %c0_i32_1 = arith.constant 0 : i32
    return %c0_i32, %c0_i32_0 : i32, i32
  }
  func.func @transform_5(%arg0: i32, %arg1: i32, %arg2: i32) -> (i32, i32, i32) {
    %c0_i32 = arith.constant 0 : i32
    %c0_i32_0 = arith.constant 0 : i32
    return %arg0, %c0_i32, %arg1 : i32, i32, i32
  }
}

</mosaic_0001>

<llo_original>
// kernel: tpu_custom_call.1
$region0: #{tpu_custom_call.1}
  #allocation0 [shape = 'u32[]', space=smem, size = 0x4, offset = 0x4, fixed_abs, tag = 'smem constant byte address 0x4 - core index']
  #allocation1 [shape = 'u32[144,128]{1,0:T(1,128)}', space=vmem, size = 0x12000, scoped, tag = 'internal scratch']
  #allocation2 [shape = 'bf16[32,128]{1,0:T(16,128)(2,1)}', space=vmem, size = 0x2000, scoped, tag = 'scratch operand']
  #allocation3 [shape = 'f32[1,128]{1,0:T(1,128)}', space=vmem, size = 0x200, scoped, tag = 'scratch operand']
  #allocation4 [shape = 'f32[1,128]{1,0:T(1,128)}', space=vmem, size = 0x200, scoped, tag = 'scratch operand']
  #allocation5 [shape = 'f32[32,128]{1,0:T(8,128)}', space=vmem, size = 0x4000, scoped, tag = 'scratch operand']
  %s0 = inlined_call_operand.vmem [shape: bf16[2,4,256], index: 0, kind: input, shape index: {}]
  %s1 = inlined_call_operand.hbm [shape: bf16[2,32,256], index: 1, kind: input, shape index: {}]
  %s2 = inlined_call_operand.hbm [shape: bf16[2,32,256], index: 2, kind: input, shape index: {}]
  %s3 = inlined_call_operand.vmem [shape: bf16[4,32], index: 3, kind: input, shape index: {}]
  %s4 = inlined_call_operand.vmem [shape: bf16[32,4], index: 4, kind: input, shape index: {}]
  %s5 = inlined_call_operand.hbm [shape: f32[2,4,256], index: 5, kind: output, shape index: {}]
  %s6 = sld [smem:[#allocation0]]
  $region69: #{tpu_custom_call.1} parent=0
    _
  %s8 = ssub.s32 1, %s6
  %s9 = scalar_select 0, %s8, %s6
  $region1: #{tpu_custom_call.1} parent=0
    #allocation6 [shape = 'u8[16384]{0}', space=vmem, size = 0x4000, scoped, tag = 'input window, operand 1']
    #allocation7 [shape = 's32[2]{0}', space=sflag, size = 0x8, scoped, tag = 'scoped memory for tpu_custom_call.1']
    #allocation8 [shape = 's32[2]{0}', space=sflag, size = 0x8, scoped, tag = 'scoped memory for tpu_custom_call.1']
    #allocation9 [shape = 'u8[16384]{0}', space=vmem, size = 0x4000, scoped, tag = 'input window, operand 2']
    #allocation10 [shape = 's32[2]{0}', space=sflag, size = 0x8, scoped, tag = 'scoped memory for tpu_custom_call.1']
    #allocation11 [shape = 'u8[4096]{0}', space=vmem, size = 0x1000, scoped, tag = 'output window, operand 0']
    %10 = vsyncpa [#allocation7], 0
    %s11 = scalar_lea.sflag [#allocation7], 1
    %12 = vsyncpa %s11, 0
    %13 = vsyncpa [#allocation10], 0
    %s14 = scalar_lea.sflag [#allocation10], 1
    %15 = vsyncpa %s14, 0
    %16 = vsyncpa [#allocation8], 0
    %s17 = scalar_lea.sflag [#allocation8], 1
    %18 = vsyncpa %s17, 0
    loop: start=0, step=1, limit=10
    $region2: #{tpu_custom_call.1} parent=1 // loop_pre_header
      _
    $region3: #{tpu_custom_call.1} parent=1 // loop_header
      %s20 = sphi 0, %s24
      %p21 = scmp.ge.s32.totalorder %s20, 10
      %s27 = sphi 0, %s46
      %s28 = sphi 0, %s42
      %s29 = sphi 0, %s38
      %s30 = sphi 0, %s27
      %s31 = sphi 0, %s28
      %s32 = sphi 0, %s29
      %s33 = sphi 0, %s30
      %s34 = sphi 0, %s31
      %s35 = sphi 0, %s32
      %s51 = sphi 0, %s53
      %s54 = sphi 0, %s51
      %s55 = sphi 0, %s54
      %s71 = sphi 0, %s55
      %s79 = sphi 0, %s81
      %s82 = sphi 0, %s79
      %s83 = sphi 0, %s82
      %s99 = sphi 0, %s83
      %s107 = sphi 0, %s109
      %s110 = sphi 0, %s107
      %s111 = sphi 0, %s110
      %s127 = sphi 0, %s111
      %s131 = sphi 0, %s131
      %s133 = sphi 0, %s131
      %s134 = sphi 0, %s133
      %s148 = sphi 0, %s134
      %s152 = sphi 0, %s152
      %s154 = sphi 0, %s152
      %s155 = sphi 0, %s154
      %s169 = sphi 0, %s155
      %s177 = sphi 0, %s179
      %s180 = sphi 0, %s177
      %s181 = sphi 0, %s180
      %s197 = sphi 0, %s181
    $region4: #{tpu_custom_call.1} parent=1 // loop_header_branch
      %23 = sbr.rel (%p21) target = $region8
    $region5: #{tpu_custom_call.1} parent=1 // loop_body
      %s25 = ssub.s32 %s20, 1
      %s26 = ssub.s32 %s20, 2
      %s36 = sadd.s32 1, %s29
      %p37 = scmp.ge.s32.totalorder %s36, 2
      %s38 = scalar_select %p37, 0, %s36
      %s39 = sadd.s32 1, %s28
      %s40 = scalar_select %p37, %s39, %s28
      %p41 = scmp.ge.s32.totalorder %s40, 2
      %s42 = scalar_select %p41, 0, %s40
      %s43 = sadd.s32 1, %s27
      %s44 = scalar_select %p41, %s43, %s27
      %p45 = scmp.ge.s32.totalorder %s44, 2
      %s46 = scalar_select %p45, 0, %s44
      %s47 = ssub.s32 %s27, %s46
      %s48 = ssub.s32 %s28, %s42
      %s49 = sor.u32 %s47, %s48
      %p50 = scmp.eq.s32.totalorder %s49, 0
      %s52 = sadd.s32 %s51, 1
      %s53 = scalar_select %p50, %s51, %s52
      %p56 = pneg %p50
      %p57 = scmp.eq.s32.totalorder %s20, 7
      %p58 = por %p56, %p57
      %p59 = scmp.ne.s32.totalorder %s51, %s54
      %p60 = scmp.eq.s32.totalorder %s20, 0
      %p61 = por %p59, %p60
      %p62 = scmp.ne.s32.totalorder %s51, %s54
      %p63 = scmp.eq.s32.totalorder %s25, 7
      %p64 = por %p62, %p63
      %p65 = scmp.ne.s32.totalorder %s54, %s55
      %p66 = scmp.eq.s32.totalorder %s25, 0
      %p67 = por %p65, %p66
      %p68 = scmp.ne.s32.totalorder %s54, %s55
      %p69 = scmp.eq.s32.totalorder %s26, 7
      %p70 = por %p68, %p69
      %p72 = scmp.ne.s32.totalorder %s55, %s71
      %p73 = scmp.eq.s32.totalorder %s26, 0
      %p74 = por %p72, %p73
      %s75 = ssub.s32 %s27, %s46
      %s76 = ssub.s32 %s29, %s38
      %s77 = sor.u32 %s75, %s76
      %p78 = scmp.eq.s32.totalorder %s77, 0
      %s80 = sadd.s32 %s79, 1
      %s81 = scalar_select %p78, %s79, %s80
      %p84 = pneg %p78
      %p85 = scmp.eq.s32.totalorder %s20, 7
      %p86 = por %p84, %p85
      %p87 = scmp.ne.s32.totalorder %s79, %s82
      %p88 = scmp.eq.s32.totalorder %s20, 0
      %p89 = por %p87, %p88
      %p90 = scmp.ne.s32.totalorder %s79, %s82
      %p91 = scmp.eq.s32.totalorder %s25, 7
      %p92 = por %p90, %p91
      %p93 = scmp.ne.s32.totalorder %s82, %s83
      %p94 = scmp.eq.s32.totalorder %s25, 0
      %p95 = por %p93, %p94
      %p96 = scmp.ne.s32.totalorder %s82, %s83
      %p97 = scmp.eq.s32.totalorder %s26, 7
      %p98 = por %p96, %p97
      %p100 = scmp.ne.s32.totalorder %s83, %s99
      %p101 = scmp.eq.s32.totalorder %s26, 0
      %p102 = por %p100, %p101
      %s103 = ssub.s32 %s27, %s46
      %s104 = ssub.s32 %s29, %s38
      %s105 = sor.u32 %s103, %s104
      %p106 = scmp.eq.s32.totalorder %s105, 0
      %s108 = sadd.s32 %s107, 1
      %s109 = scalar_select %p106, %s107, %s108
      %p112 = pneg %p106
      %p113 = scmp.eq.s32.totalorder %s20, 7
      %p114 = por %p112, %p113
      %p115 = scmp.ne.s32.totalorder %s107, %s110
      %p116 = scmp.eq.s32.totalorder %s20, 0
      %p117 = por %p115, %p116
      %p118 = scmp.ne.s32.totalorder %s107, %s110
      %p119 = scmp.eq.s32.totalorder %s25, 7
      %p120 = por %p118, %p119
      %p121 = scmp.ne.s32.totalorder %s110, %s111
      %p122 = scmp.eq.s32.totalorder %s25, 0
      %p123 = por %p121, %p122
      %p124 = scmp.ne.s32.totalorder %s110, %s111
      %p125 = scmp.eq.s32.totalorder %s26, 7
      %p126 = por %p124, %p125
      %p128 = scmp.ne.s32.totalorder %s111, %s127
      %p129 = scmp.eq.s32.totalorder %s26, 0
      %p130 = por %p128, %p129
      %s132 = sadd.s32 %s131, 1
      %p135 = scmp.eq.s32.totalorder %s20, 7
      %p136 = scmp.ne.s32.totalorder %s131, %s133
      %p137 = scmp.eq.s32.totalorder %s20, 0
      %p138 = por %p136, %p137
      %p139 = scmp.ne.s32.totalorder %s131, %s133
      %p140 = scmp.eq.s32.totalorder %s25, 7
      %p141 = por %p139, %p140
      %p142 = scmp.ne.s32.totalorder %s133, %s134
      %p143 = scmp.eq.s32.totalorder %s25, 0
      %p144 = por %p142, %p143
      %p145 = scmp.ne.s32.totalorder %s133, %s134
      %p146 = scmp.eq.s32.totalorder %s26, 7
      %p147 = por %p145, %p146
      %p149 = scmp.ne.s32.totalorder %s134, %s148
      %p150 = scmp.eq.s32.totalorder %s26, 0
      %p151 = por %p149, %p150
      %s153 = sadd.s32 %s152, 1
      %p156 = scmp.eq.s32.totalorder %s20, 7
      %p157 = scmp.ne.s32.totalorder %s152, %s154
      %p158 = scmp.eq.s32.totalorder %s20, 0
      %p159 = por %p157, %p158
      %p160 = scmp.ne.s32.totalorder %s152, %s154
      %p161 = scmp.eq.s32.totalorder %s25, 7
      %p162 = por %p160, %p161
      %p163 = scmp.ne.s32.totalorder %s154, %s155
      %p164 = scmp.eq.s32.totalorder %s25, 0
      %p165 = por %p163, %p164
      %p166 = scmp.ne.s32.totalorder %s154, %s155
      %p167 = scmp.eq.s32.totalorder %s26, 7
      %p168 = por %p166, %p167
      %p170 = scmp.ne.s32.totalorder %s155, %s169
      %p171 = scmp.eq.s32.totalorder %s26, 0
      %p172 = por %p170, %p171
      %s173 = ssub.s32 %s27, %s46
      %s174 = ssub.s32 %s28, %s42
      %s175 = sor.u32 %s173, %s174
      %p176 = scmp.eq.s32.totalorder %s175, 0
      %s178 = sadd.s32 %s177, 1
      %s179 = scalar_select %p176, %s177, %s178
      %p182 = pneg %p176
      %p183 = scmp.eq.s32.totalorder %s20, 7
      %p184 = por %p182, %p183
      %p185 = scmp.ne.s32.totalorder %s177, %s180
      %p186 = scmp.eq.s32.totalorder %s20, 0
      %p187 = por %p185, %p186
      %p188 = scmp.ne.s32.totalorder %s177, %s180
      %p189 = scmp.eq.s32.totalorder %s25, 7
      %p190 = por %p188, %p189
      %p191 = scmp.ne.s32.totalorder %s180, %s181
      %p192 = scmp.eq.s32.totalorder %s25, 0
      %p193 = por %p191, %p192
      %p194 = scmp.ne.s32.totalorder %s180, %s181
      %p195 = scmp.eq.s32.totalorder %s26, 7
      %p196 = por %p194, %p195
      %p198 = scmp.ne.s32.totalorder %s181, %s197
      %p199 = scmp.eq.s32.totalorder %s26, 0
      %p200 = por %p198, %p199
      %p201 = scmp.le.s32.totalorder 1, %s20
      %p202 = scmp.lt.s32.totalorder %s20, 9
      %p203 = pnand %p201, %p202
      %p204 = pneg %p203
      // Predicated region
      $region9: #{tpu_custom_call.1} parent=5 // pred_check
        _
      $region10: #{tpu_custom_call.1} parent=5 // pred_check_branch
        %206 = sbr.rel (%p203) target = $region12
      $region11: #{tpu_custom_call.1} parent=5 // pred_region
        %s207 = ssub.s32 %s20, 1
        // Predicated region
        $region13: #{tpu_custom_call.1} parent=11 // pred_check
          %p208 = pneg %p144
        $region14: #{tpu_custom_call.1} parent=11 // pred_check_branch
          %210 = sbr.rel (%p208) target = $region16
        $region15: #{tpu_custom_call.1} parent=11 // pred_region
          _
        $region16: #{tpu_custom_call.1} parent=11 // pred_fallthru
          _
        // Predicated region
        $region17: #{tpu_custom_call.1} parent=11 // pred_check
          %p211 = pneg %p165
        $region18: #{tpu_custom_call.1} parent=11 // pred_check_branch
          %213 = sbr.rel (%p211) target = $region20
        $region19: #{tpu_custom_call.1} parent=11 // pred_region
          _
        $region20: #{tpu_custom_call.1} parent=11 // pred_fallthru
          _
      $region12: #{tpu_custom_call.1} parent=5 // pred_fallthru
        _
      %p214 = scmp.lt.s32.totalorder %s20, 8
      // Predicated region
      $region21: #{tpu_custom_call.1} parent=5 // pred_check
        %p215 = pneg %p214
      $region22: #{tpu_custom_call.1} parent=5 // pred_check_branch
        %217 = sbr.rel (%p215) target = $region24
      $region23: #{tpu_custom_call.1} parent=5 // pred_region
        // Predicated region
        $region25: #{tpu_custom_call.1} parent=23 // pred_check
          %p218 = pneg %p61
        $region26: #{tpu_custom_call.1} parent=23 // pred_check_branch
          %220 = sbr.rel (%p218) target = $region28
        $region27: #{tpu_custom_call.1} parent=23 // pred_region
          %p221 = scmp.lt.s32.totalorder %s27, 1
          %s222 = scalar_select %p221, %s27, 1
          %p223 = scmp.lt.s32.totalorder %s28, 1
          %s224 = scalar_select %p223, %s28, 1
          %s225 = smul.addr %s222, 2
          %s226 = sadd.s32 %s224, %s225
          %s227 = smul.addr %s226, 2
          %s228 = scalar_lea.vmem %s0, %s227
        $region28: #{tpu_custom_call.1} parent=23 // pred_fallthru
          _
        // Predicated region
        $region29: #{tpu_custom_call.1} parent=23 // pred_check
          %p229 = pneg %p89
        $region30: #{tpu_custom_call.1} parent=23 // pred_check_branch
          %231 = sbr.rel (%p229) target = $region32
        $region31: #{tpu_custom_call.1} parent=23 // pred_region
          %s232 = sand.u32 %s79, 1
          %s233 = scalar_lea.sflag [#allocation7], %s232
          %s234 = sand.u32 %s79, 1
          %s235 = smul.addr %s234, 16
          %s236 = scalar_lea.vmem [#allocation6], %s235
          %s238 = ssub.s32 256, 256
          %239 = vsyncadd %s233, %s238
          %s240 = smul.addr %s27, 8
          %s241 = sadd.s32 %s29, %s240
          %s242 = smul.addr %s241, 64
          %s243 = scalar_lea.hbm %s1, %s242
          %s244 = sshll.u32 %s236, 4
          %s245 = int_to_ptr.vmem [resolvable:$true] %s244
          %250 = dma.hbm_to_vmem [thread:$0]  %s243, 256, %s245, %s233, 128, 64, 4
        $region32: #{tpu_custom_call.1} parent=23 // pred_fallthru
          _
        // Predicated region
        $region33: #{tpu_custom_call.1} parent=23 // pred_check
          %p251 = pneg %p117
        $region34: #{tpu_custom_call.1} parent=23 // pred_check_branch
          %253 = sbr.rel (%p251) target = $region36
        $region35: #{tpu_custom_call.1} parent=23 // pred_region
          %s254 = sand.u32 %s107, 1
          %s255 = scalar_lea.sflag [#allocation10], %s254
          %s256 = sand.u32 %s107, 1
          %s257 = smul.addr %s256, 16
          %s258 = scalar_lea.vmem [#allocation9], %s257
          %s260 = ssub.s32 256, 256
          %261 = vsyncadd %s255, %s260
          %s262 = smul.addr %s27, 8
          %s263 = sadd.s32 %s29, %s262
          %s264 = smul.addr %s263, 64
          %s265 = scalar_lea.hbm %s2, %s264
          %s266 = sshll.u32 %s258, 4
          %s267 = int_to_ptr.vmem [resolvable:$true] %s266
          %272 = dma.hbm_to_vmem [thread:$0]  %s265, 256, %s267, %s255, 128, 64, 4
        $region36: #{tpu_custom_call.1} parent=23 // pred_fallthru
          _
      $region24: #{tpu_custom_call.1} parent=5 // pred_fallthru
        _
      %p273 = scmp.le.s32.totalorder 1, %s20
      %p274 = scmp.lt.s32.totalorder %s20, 9
      %p275 = pnand %p273, %p274
      %p276 = pneg %p275
      // Predicated region
      $region37: #{tpu_custom_call.1} parent=5 // pred_check
        _
      $region38: #{tpu_custom_call.1} parent=5 // pred_check_branch
        %278 = sbr.rel (%p275) target = $region40
      $region39: #{tpu_custom_call.1} parent=5 // pred_region
        %s279 = ssub.s32 %s20, 1
        %s280 = sand.u32 %s82, 1
        %s281 = scalar_lea.sflag [#allocation7], %s280
        %s282 = sand.u32 %s82, 1
        %s283 = smul.addr %s282, 16
        %s284 = scalar_lea.vmem [#allocation6], %s283
        // Predicated region
        $region41: #{tpu_custom_call.1} parent=39 // pred_check
          %p285 = pneg %p95
        $region42: #{tpu_custom_call.1} parent=39 // pred_check_branch
          %287 = sbr.rel (%p285) target = $region44
        $region43: #{tpu_custom_call.1} parent=39 // pred_region
          %288 = dma.done %s281, 256
        $region44: #{tpu_custom_call.1} parent=39 // pred_fallthru
          _
        %s289 = sand.u32 %s110, 1
        %s290 = scalar_lea.sflag [#allocation10], %s289
        %s291 = sand.u32 %s110, 1
        %s292 = smul.addr %s291, 16
        %s293 = scalar_lea.vmem [#allocation9], %s292
        // Predicated region
        $region45: #{tpu_custom_call.1} parent=39 // pred_check
          %p294 = pneg %p123
        $region46: #{tpu_custom_call.1} parent=39 // pred_check_branch
          %296 = sbr.rel (%p294) target = $region48
        $region47: #{tpu_custom_call.1} parent=39 // pred_region
          %297 = dma.done %s290, 256
        $region48: #{tpu_custom_call.1} parent=39 // pred_fallthru
          _
        %p298 = scmp.lt.s32.totalorder %s30, 1
        %s299 = scalar_select %p298, %s30, 1
        %p300 = scmp.lt.s32.totalorder %s31, 1
        %s301 = scalar_select %p300, %s31, 1
        %s302 = smul.addr %s299, 2
        %s303 = sadd.s32 %s301, %s302
        %s304 = smul.addr %s303, 2
        %s305 = scalar_lea.vmem %s0, %s304
        %p306 = pneg %p67
        %p307 = pneg %p64
        %s308 = sand.u32 %s82, 1
        %s309 = scalar_lea.sflag [#allocation7], %s308
        %s310 = sand.u32 %s82, 1
        %s311 = smul.addr %s310, 16
        %s312 = scalar_lea.vmem [#allocation6], %s311
        %p313 = pneg %p95
        %p314 = pneg %p92
        %s315 = sand.u32 %s110, 1
        %s316 = scalar_lea.sflag [#allocation10], %s315
        %s317 = sand.u32 %s110, 1
        %s318 = smul.addr %s317, 16
        %s319 = scalar_lea.vmem [#allocation9], %s318
        %p320 = pneg %p123
        %p321 = pneg %p120
        %p322 = pneg %p144
        %p323 = pneg %p141
        %p324 = pneg %p165
        %p325 = pneg %p162
        %p326 = pneg %p193
        %p327 = pneg %p190
        %s328 = sand.u32 %s180, 1
        %s329 = scalar_lea.sflag [#allocation8], %s328
        %s330 = sand.u32 %s180, 1
        %s331 = smul.addr %s330, 4
        %s332 = scalar_lea.vmem [#allocation11], %s331
        %p333 = scmp.lt.s32.totalorder %s30, 1
        %s334 = scalar_select %p333, %s30, 1
        %p335 = scmp.lt.s32.totalorder %s31, 1
        %s336 = scalar_select %p335, %s31, 1
        %s337 = smul.addr %s334, 2
        %s338 = sadd.s32 %s336, %s337
        %s339 = smul.addr %s338, 2
        %s340 = scalar_lea.vmem %s0, %s339
        %p342 = scmp.eq.s32.totalorder %s32, 0
        // Predicated region
        $region49: #{tpu_custom_call.1} parent=39 // pred_check
          %p343 = pneg %p342
        $region50: #{tpu_custom_call.1} parent=39 // pred_check_branch
          %345 = sbr.rel (%p343) target = $region52
        $region51: #{tpu_custom_call.1} parent=39 // pred_region
          %v346 = vld [vmem:[%s340] sm:$0x3]
          %v347 = vld [vmem:[%s3] sm:$0x3]
          %348 = vxpose.xlu0.c.b16.start [1/8] %v347, 128
          %349 = vxpose.xlu0.c.b16.cont [2/8] 0, 128
          %350 = vxpose.xlu0.c.b16.cont [3/8] 0, 128
          %351 = vxpose.xlu0.c.b16.cont [4/8] 0, 128
          %352 = vxpose.xlu0.c.b16.cont [5/8] 0, 128
          %353 = vxpose.xlu0.c.b16.cont [6/8] 0, 128
          %354 = vxpose.xlu0.c.b16.cont [7/8] 0, 128
          %355 = vxpose.xlu0.c.b16.end [8/8] 0, 128
          %v356 = vpop.trf.xlu0
          %v357 = vpop.trf.xlu0
          %v358 = vpop.trf.xlu0
          %v359 = vpop.trf.xlu0
          %v360 = vpop.trf.xlu0
          %v361 = vpop.trf.xlu0
          %v362 = vpop.trf.xlu0
          %v363 = vpop.trf.xlu0
          %vm364 = vcmask 31744
          %v366 = vsel %vm364, %v356, 0
          %v369 = vsel %vm364, %v357, 0
          %vm371 = vcmask 1041408
          %v373 = vsel %vm371, %v346, 0
          %375 = vmatprep.subr.bf16.mxu0 0
          %376 = vmatpush1.bf16.msra.mxu0 %v373
          %377 = vmatprep.subr.bf16.mxu0 0
          %378 = vmatpush1.bf16.msra.mxu0 0
          %379 = vmatprep.subr.bf16.mxu0 0
          %380 = vmatpush1.bf16.msra.mxu0 0
          %381 = vmatprep.subr.bf16.mxu0 0
          %382 = vmatpush1.bf16.msra.mxu0 0
          %383 = vmatprep.subr.bf16.mxu0 0
          %384 = vmatpush1.bf16.msra.mxu0 0
          %385 = vmatprep.subr.bf16.mxu0 0
          %386 = vmatpush1.bf16.msra.mxu0 0
          %387 = vmatprep.subr.bf16.mxu0 0
          %388 = vmatpush1.bf16.msra.mxu0 0
          %389 = vmatprep.subr.bf16.mxu0 0
          %390 = vmatpush1.bf16.msra.mxu0 0
          %391 = vmatprep.subr.bf16.mxu0 0
          %392 = vmatpush1.bf16.msra.mxu0 0
          %393 = vmatprep.subr.bf16.mxu0 0
          %394 = vmatpush1.bf16.msra.mxu0 0
          %395 = vmatprep.subr.bf16.mxu0 0
          %396 = vmatpush1.bf16.msra.mxu0 0
          %397 = vmatprep.subr.bf16.mxu0 0
          %398 = vmatpush1.bf16.msra.mxu0 0
          %399 = vmatprep.subr.bf16.mxu0 0
          %400 = vmatpush1.bf16.msra.mxu0 0
          %401 = vmatprep.subr.bf16.mxu0 0
          %402 = vmatpush1.bf16.msra.mxu0 0
          %403 = vmatprep.subr.bf16.mxu0 0
          %404 = vmatpush1.bf16.msra.mxu0 0
          %405 = vmatprep.subr.bf16.mxu0 0
          %406 = vmatpush1.bf16.msra.mxu0 0
          %407 = vmatprep.mubr.bf16.mxu0 0
          %408 = vmatmul.mubr.bf16.gmra.mrb[0].mxu0 %v366
          %v409 = vpop.f32.mrb[0].mxu0
          %v410 = vadd.f32 0.0, %v409
          %v411 = vpop.f32.mrb[0].mxu0
          %v412 = vpop.f32.mrb[0].mxu0
          %v413 = vadd.f32 0.0, %v412
          %v414 = vpop.f32.mrb[0].mxu0
          %415 = vmatprep.mubr.bf16.mxu0 0
          %416 = vmatmul.mubr.bf16.gmra.mrb[0].mxu0 %v369
          %v417 = vpop.f32.mrb[0].mxu0
          %v418 = vadd.f32 0.0, %v417
          %v419 = vpop.f32.mrb[0].mxu0
          %v420 = vpop.f32.mrb[0].mxu0
          %v421 = vadd.f32 0.0, %v420
          %v422 = vpop.f32.mrb[0].mxu0
          %423 = vdwg.mxu0
          %v424 = vmul.f32 %v410, 0.17677669
          %v425 = vmul.f32 %v413, 0.17677669
          %v426 = vmul.f32 %v418, 0.17677669
          %v427 = vmul.f32 %v421, 0.17677669
          %v428 = vpack.c.bf16 %v425, %v424
          %v429 = vpack.c.bf16 %v427, %v426
          %430 = vst [vmem:[#allocation2] sm:$0xff] %v428
          %431 = vst [vmem:[#allocation2 + $0x8] sm:$0xff] %v429
          %432 = vst [vmem:[#allocation3] sm:$0x1] -inf
          %433 = vst [vmem:[#allocation4] sm:$0x1] 0.0
          %434 = vst [vmem:[#allocation5] sm:$0xff] 0.0
          %435 = vst [vmem:[#allocation5 + $0x8] sm:$0xff] 0.0
          %436 = vst [vmem:[#allocation5 + $0x10] sm:$0xff] 0.0
          %437 = vst [vmem:[#allocation5 + $0x18] sm:$0xff] 0.0
        $region52: #{tpu_custom_call.1} parent=39 // pred_fallthru
          _
        %v438 = vld [vmem:[%s284] sm:$0xf]
        %v439 = vld [vmem:[%s284 + $0x4] sm:$0xf]
        %v440 = vld [vmem:[%s284 + $0x8] sm:$0xf]
        %v441 = vld [vmem:[%s284 + $0xc] sm:$0xf]
        %v442 = vld [vmem:[%s293] sm:$0xf]
        %v443 = vld [vmem:[%s293 + $0x4] sm:$0xf]
        %v444 = vld [vmem:[%s293 + $0x8] sm:$0xf]
        %v445 = vld [vmem:[%s293 + $0xc] sm:$0xf]
        %v446 = vld [vmem:[#allocation2] sm:$0xff]
        %v447 = vld [vmem:[#allocation2 + $0x8] sm:$0xff]
        %v452 = vunpack.c.l.b16 %v438
        %v453 = vunpack.c.l.b16 %v439
        %v454 = vunpack.c.l.b16 %v440
        %v455 = vunpack.c.l.b16 %v441
        %v456 = vpack.c.b16 %v453, %v452
        %v457 = vpack.c.b16 %v455, %v454
        %460 = vxpose.xlu0.c.b16.start [1/8] %v456, 128
        %461 = vxpose.xlu0.c.b16.cont [2/8] %v457, 128
        %462 = vxpose.xlu0.c.b16.cont [3/8] 0, 128
        %463 = vxpose.xlu0.c.b16.cont [4/8] 0, 128
        %464 = vxpose.xlu0.c.b16.cont [5/8] 0, 128
        %465 = vxpose.xlu0.c.b16.cont [6/8] 0, 128
        %466 = vxpose.xlu0.c.b16.cont [7/8] 0, 128
        %467 = vxpose.xlu0.c.b16.end [8/8] 0, 128
        %v468 = vpop.trf.xlu0
        %v469 = vpop.trf.xlu0
        %v470 = vpop.trf.xlu0
        %v471 = vpop.trf.xlu0
        %v472 = vpop.trf.xlu0
        %v473 = vpop.trf.xlu0
        %v474 = vpop.trf.xlu0
        %v475 = vpop.trf.xlu0
        %vm476 = vcmask 261120
        %v478 = vsel %vm476, %v468, 0
        %v481 = vsel %vm476, %v469, 0
        %v484 = vsel %vm476, %v470, 0
        %v487 = vsel %vm476, %v471, 0
        %v490 = vsel %vm476, %v472, 0
        %v493 = vsel %vm476, %v473, 0
        %v496 = vsel %vm476, %v474, 0
        %v499 = vsel %vm476, %v475, 0
        %501 = vmatprep.subr.bf16.mxu0 0
        %502 = vmatpush1.bf16.msra.mxu0 %v446
        %503 = vmatprep.subr.bf16.mxu0 0
        %504 = vmatpush1.bf16.msra.mxu0 %v447
        %505 = vmatprep.subr.bf16.mxu0 0
        %506 = vmatpush1.bf16.msra.mxu0 0
        %507 = vmatprep.subr.bf16.mxu0 0
        %508 = vmatpush1.bf16.msra.mxu0 0
        %509 = vmatprep.subr.bf16.mxu0 0
        %510 = vmatpush1.bf16.msra.mxu0 0
        %511 = vmatprep.subr.bf16.mxu0 0
        %512 = vmatpush1.bf16.msra.mxu0 0
        %513 = vmatprep.subr.bf16.mxu0 0
        %514 = vmatpush1.bf16.msra.mxu0 0
        %515 = vmatprep.subr.bf16.mxu0 0
        %516 = vmatpush1.bf16.msra.mxu0 0
        %517 = vmatprep.subr.bf16.mxu0 0
        %518 = vmatpush1.bf16.msra.mxu0 0
        %519 = vmatprep.subr.bf16.mxu0 0
        %520 = vmatpush1.bf16.msra.mxu0 0
        %521 = vmatprep.subr.bf16.mxu0 0
        %522 = vmatpush1.bf16.msra.mxu0 0
        %523 = vmatprep.subr.bf16.mxu0 0
        %524 = vmatpush1.bf16.msra.mxu0 0
        %525 = vmatprep.subr.bf16.mxu0 0
        %526 = vmatpush1.bf16.msra.mxu0 0
        %527 = vmatprep.subr.bf16.mxu0 0
        %528 = vmatpush1.bf16.msra.mxu0 0
        %529 = vmatprep.subr.bf16.mxu0 0
        %530 = vmatpush1.bf16.msra.mxu0 0
        %531 = vmatprep.subr.bf16.mxu0 0
        %532 = vmatpush1.bf16.msra.mxu0 0
        %533 = vmatprep.mubr.bf16.mxu0 0
        %534 = vmatmul.mubr.bf16.gmra.mrb[0].mxu0 %v478
        %v535 = vpop.f32.mrb[0].mxu0
        %v536 = vadd.f32 0.0, %v535
        %v537 = vpop.f32.mrb[0].mxu0
        %v538 = vpop.f32.mrb[0].mxu0
        %v539 = vadd.f32 0.0, %v538
        %v540 = vpop.f32.mrb[0].mxu0
        %541 = vmatprep.mubr.bf16.mxu0 0
        %542 = vmatmul.mubr.bf16.gmra.mrb[0].mxu0 %v481
        %v543 = vpop.f32.mrb[0].mxu0
        %v544 = vadd.f32 0.0, %v543
        %v545 = vpop.f32.mrb[0].mxu0
        %v546 = vpop.f32.mrb[0].mxu0
        %v547 = vadd.f32 0.0, %v546
        %v548 = vpop.f32.mrb[0].mxu0
        %549 = vmatprep.mubr.bf16.mxu0 0
        %550 = vmatmul.mubr.bf16.gmra.mrb[0].mxu0 %v484
        %v551 = vpop.f32.mrb[0].mxu0
        %v552 = vadd.f32 0.0, %v551
        %v553 = vpop.f32.mrb[0].mxu0
        %v554 = vpop.f32.mrb[0].mxu0
        %v555 = vadd.f32 0.0, %v554
        %v556 = vpop.f32.mrb[0].mxu0
        %557 = vmatprep.mubr.bf16.mxu0 0
        %558 = vmatmul.mubr.bf16.gmra.mrb[0].mxu0 %v487
        %v559 = vpop.f32.mrb[0].mxu0
        %v560 = vadd.f32 0.0, %v559
        %v561 = vpop.f32.mrb[0].mxu0
        %v562 = vpop.f32.mrb[0].mxu0
        %v563 = vadd.f32 0.0, %v562
        %v564 = vpop.f32.mrb[0].mxu0
        %565 = vmatprep.mubr.bf16.mxu0 0
        %566 = vmatmul.mubr.bf16.gmra.mrb[0].mxu0 %v490
        %v567 = vpop.f32.mrb[0].mxu0
        %v568 = vadd.f32 0.0, %v567
        %v569 = vpop.f32.mrb[0].mxu0
        %v570 = vpop.f32.mrb[0].mxu0
        %v571 = vadd.f32 0.0, %v570
        %v572 = vpop.f32.mrb[0].mxu0
        %573 = vmatprep.mubr.bf16.mxu0 0
        %574 = vmatmul.mubr.bf16.gmra.mrb[0].mxu0 %v493
        %v575 = vpop.f32.mrb[0].mxu0
        %v576 = vadd.f32 0.0, %v575
        %v577 = vpop.f32.mrb[0].mxu0
        %v578 = vpop.f32.mrb[0].mxu0
        %v579 = vadd.f32 0.0, %v578
        %v580 = vpop.f32.mrb[0].mxu0
        %581 = vmatprep.mubr.bf16.mxu0 0
        %582 = vmatmul.mubr.bf16.gmra.mrb[0].mxu0 %v496
        %v583 = vpop.f32.mrb[0].mxu0
        %v584 = vadd.f32 0.0, %v583
        %v585 = vpop.f32.mrb[0].mxu0
        %v586 = vpop.f32.mrb[0].mxu0
        %v587 = vadd.f32 0.0, %v586
        %v588 = vpop.f32.mrb[0].mxu0
        %589 = vmatprep.mubr.bf16.mxu0 0
        %590 = vmatmul.mubr.bf16.gmra.mrb[0].mxu0 %v499
        %v591 = vpop.f32.mrb[0].mxu0
        %v592 = vadd.f32 0.0, %v591
        %v593 = vpop.f32.mrb[0].mxu0
        %v594 = vpop.f32.mrb[0].mxu0
        %v595 = vadd.f32 0.0, %v594
        %v596 = vpop.f32.mrb[0].mxu0
        %597 = vdwg.mxu0
        %v598 = vld [vmem:[#allocation3] sm:$0x1]
        %v599 = vmax.f32 %v536, %v552
        %v600 = vmax.f32 %v539, %v555
        %v601 = vmax.f32 %v544, %v560
        %v602 = vmax.f32 %v547, %v563
        %v603 = vmax.f32 %v599, %v568
        %v604 = vmax.f32 %v600, %v571
        %v605 = vmax.f32 %v601, %v576
        %v606 = vmax.f32 %v602, %v579
        %v607 = vmax.f32 %v603, %v584
        %v608 = vmax.f32 %v604, %v587
        %v609 = vmax.f32 %v605, %v592
        %v610 = vmax.f32 %v606, %v595
        %v611 = vmax.f32 %v607, %v608
        %v612 = vmax.f32 %v609, %v610
        %v613 = vmax.f32 %v611, %v612
        %v614 = vrot.slane %v613, 4
        %v615 = vmax.f32 %v613, %v614
        %v616 = vrot.slane %v615, 2
        %v617 = vmax.f32 %v615, %v616
        %v618 = vrot.slane %v617, 1
        %v619 = vmax.f32 %v617, %v618
        %v620 = vmax.f32 %v598, %v619
        %v621 = vsub.f32 %v598, %v620
        %v622 = vmul.f32 %v621, 1.442695
        %v623 = vpow.pop %v622
        %v625 = vlaneseq
        %v626 = vshrl.u32 %v625, 7
        %v627 = vsub.s32 0, %v626
        %v628 = vrot.slane %v620, %v627
        %v630 = vsub.f32 %v536, %v628
        %v631 = vsub.f32 %v539, %v628
        %v632 = vsub.f32 %v544, %v628
        %v633 = vsub.f32 %v547, %v628
        %v634 = vsub.f32 %v552, %v628
        %v635 = vsub.f32 %v555, %v628
        %v636 = vsub.f32 %v560, %v628
        %v637 = vsub.f32 %v563, %v628
        %v638 = vsub.f32 %v568, %v628
        %v639 = vsub.f32 %v571, %v628
        %v640 = vsub.f32 %v576, %v628
        %v641 = vsub.f32 %v579, %v628
        %v642 = vsub.f32 %v584, %v628
        %v643 = vsub.f32 %v587, %v628
        %v644 = vsub.f32 %v592, %v628
        %v645 = vsub.f32 %v595, %v628
        %v646 = vmul.f32 %v630, 1.442695
        %v647 = vpow.pop %v646
        %v648 = vmul.f32 %v631, 1.442695
        %v649 = vpow.pop %v648
        %v650 = vmul.f32 %v632, 1.442695
        %v651 = vpow.pop %v650
        %v652 = vmul.f32 %v633, 1.442695
        %v653 = vpow.pop %v652
        %v654 = vmul.f32 %v634, 1.442695
        %v655 = vpow.pop %v654
        %v656 = vmul.f32 %v635, 1.442695
        %v657 = vpow.pop %v656
        %v658 = vmul.f32 %v636, 1.442695
        %v659 = vpow.pop %v658
        %v660 = vmul.f32 %v637, 1.442695
        %v661 = vpow.pop %v660
        %v662 = vmul.f32 %v638, 1.442695
        %v663 = vpow.pop %v662
        %v664 = vmul.f32 %v639, 1.442695
        %v665 = vpow.pop %v664
        %v666 = vmul.f32 %v640, 1.442695
        %v667 = vpow.pop %v666
        %v668 = vmul.f32 %v641, 1.442695
        %v669 = vpow.pop %v668
        %v670 = vmul.f32 %v642, 1.442695
        %v671 = vpow.pop %v670
        %v672 = vmul.f32 %v643, 1.442695
        %v673 = vpow.pop %v672
        %v674 = vmul.f32 %v644, 1.442695
        %v675 = vpow.pop %v674
        %v676 = vmul.f32 %v645, 1.442695
        %v677 = vpow.pop %v676
        %v678 = vld [vmem:[#allocation4] sm:$0x1]
        %v679 = vmul.f32 %v623, %v678
        %v680 = vadd.f32 %v647, %v649
        %v681 = vadd.f32 %v680, %v651
        %v682 = vadd.f32 %v681, %v653
        %v683 = vadd.f32 %v682, %v655
        %v684 = vadd.f32 %v683, %v657
        %v685 = vadd.f32 %v684, %v659
        %v686 = vadd.f32 %v685, %v661
        %v687 = vadd.f32 %v686, %v663
        %v688 = vadd.f32 %v687, %v665
        %v689 = vadd.f32 %v688, %v667
        %v690 = vadd.f32 %v689, %v669
        %v691 = vadd.f32 %v690, %v671
        %v692 = vadd.f32 %v691, %v673
        %v693 = vadd.f32 %v692, %v675
        %v694 = vadd.f32 %v693, %v677
        %v695 = vrot.slane %v694, 4
        %v696 = vadd.f32 %v694, %v695
        %v697 = vrot.slane %v696, 2
        %v698 = vadd.f32 %v696, %v697
        %v699 = vrot.slane %v698, 1
        %v700 = vadd.f32 %v698, %v699
        %v701 = vadd.f32 %v679, %v700
        %702 = vst [vmem:[#allocation4] sm:$0x1] %v701
        %v703 = vld [vmem:[#allocation5] sm:$0xff]
        %v704 = vld [vmem:[#allocation5 + $0x8] sm:$0xff]
        %v705 = vld [vmem:[#allocation5 + $0x10] sm:$0xff]
        %v706 = vld [vmem:[#allocation5 + $0x18] sm:$0xff]
        %v708 = vlaneseq
        %v709 = vshrl.u32 %v708, 7
        %v710 = vsub.s32 0, %v709
        %v711 = vrot.slane %v623, %v710
        %v713 = vmul.f32 %v711, %v703
        %v714 = vmul.f32 %v711, %v704
        %v715 = vmul.f32 %v711, %v705
        %v716 = vmul.f32 %v711, %v706
        %v717 = vpack.c.bf16 %v649, %v647
        %v718 = vpack.c.bf16 %v653, %v651
        %v719 = vpack.c.bf16 %v657, %v655
        %v720 = vpack.c.bf16 %v661, %v659
        %v721 = vpack.c.bf16 %v665, %v663
        %v722 = vpack.c.bf16 %v669, %v667
        %v723 = vpack.c.bf16 %v673, %v671
        %v724 = vpack.c.bf16 %v677, %v675
        %v729 = vunpack.c.l.b16 %v442
        %v730 = vunpack.c.l.b16 %v443
        %v731 = vunpack.c.l.b16 %v444
        %v732 = vunpack.c.l.b16 %v445
        %v733 = vpack.c.b16 %v730, %v729
        %v734 = vpack.c.b16 %v732, %v731
        %737 = vmatprep.subr.bf16.mxu0 0
        %738 = vmatpush1.bf16.msra.mxu0 %v717
        %739 = vmatprep.subr.bf16.mxu0 0
        %740 = vmatpush1.bf16.msra.mxu0 %v718
        %741 = vmatprep.subr.bf16.mxu0 0
        %742 = vmatpush1.bf16.msra.mxu0 %v719
        %743 = vmatprep.subr.bf16.mxu0 0
        %744 = vmatpush1.bf16.msra.mxu0 %v720
        %745 = vmatprep.subr.bf16.mxu0 0
        %746 = vmatpush1.bf16.msra.mxu0 %v721
        %747 = vmatprep.subr.bf16.mxu0 0
        %748 = vmatpush1.bf16.msra.mxu0 %v722
        %749 = vmatprep.subr.bf16.mxu0 0
        %750 = vmatpush1.bf16.msra.mxu0 %v723
        %751 = vmatprep.subr.bf16.mxu0 0
        %752 = vmatpush1.bf16.msra.mxu0 %v724
        %753 = vmatprep.subr.bf16.mxu0 0
        %754 = vmatpush1.bf16.msra.mxu0 0
        %755 = vmatprep.subr.bf16.mxu0 0
        %756 = vmatpush1.bf16.msra.mxu0 0
        %757 = vmatprep.subr.bf16.mxu0 0
        %758 = vmatpush1.bf16.msra.mxu0 0
        %759 = vmatprep.subr.bf16.mxu0 0
        %760 = vmatpush1.bf16.msra.mxu0 0
        %761 = vmatprep.subr.bf16.mxu0 0
        %762 = vmatpush1.bf16.msra.mxu0 0
        %763 = vmatprep.subr.bf16.mxu0 0
        %764 = vmatpush1.bf16.msra.mxu0 0
        %765 = vmatprep.subr.bf16.mxu0 0
        %766 = vmatpush1.bf16.msra.mxu0 0
        %767 = vmatprep.subr.bf16.mxu0 0
        %768 = vmatpush1.bf16.msra.mxu0 0
        %769 = vmatprep.mubr.bf16.mxu0 0
        %770 = vmatmul.mubr.bf16.gmra.mrb[0].mxu0 %v733
        %v771 = vpop.f32.mrb[0].mxu0
        %v772 = vadd.f32 0.0, %v771
        %v773 = vpop.f32.mrb[0].mxu0
        %v774 = vpop.f32.mrb[0].mxu0
        %v775 = vadd.f32 0.0, %v774
        %v776 = vpop.f32.mrb[0].mxu0
        %777 = vmatprep.mubr.bf16.mxu0 0
        %778 = vmatmul.mubr.bf16.gmra.mrb[0].mxu0 %v734
        %v779 = vpop.f32.mrb[0].mxu0
        %v780 = vadd.f32 0.0, %v779
        %v781 = vpop.f32.mrb[0].mxu0
        %v782 = vpop.f32.mrb[0].mxu0
        %v783 = vadd.f32 0.0, %v782
        %v784 = vpop.f32.mrb[0].mxu0
        %785 = vdwg.mxu0
        %v786 = vadd.f32 %v713, %v772
        %v787 = vadd.f32 %v714, %v775
        %v788 = vadd.f32 %v715, %v780
        %v789 = vadd.f32 %v716, %v783
        %790 = vst [vmem:[#allocation5] sm:$0xff] %v786
        %791 = vst [vmem:[#allocation5 + $0x8] sm:$0xff] %v787
        %792 = vst [vmem:[#allocation5 + $0x10] sm:$0xff] %v788
        %793 = vst [vmem:[#allocation5 + $0x18] sm:$0xff] %v789
        %794 = vst [vmem:[#allocation3] sm:$0x1] %v620
        %p795 = scmp.eq.s32.totalorder %s32, 1
        // Predicated region
        $region53: #{tpu_custom_call.1} parent=39 // pred_check
          %p796 = pneg %p795
        $region54: #{tpu_custom_call.1} parent=39 // pred_check_branch
          %798 = sbr.rel (%p796) target = $region56
        $region55: #{tpu_custom_call.1} parent=39 // pred_region
          %v799 = vld [vmem:[#allocation4] sm:$0x1]
          %v800 = vrcp.pop %v799
          %v801 = vld [vmem:[#allocation5] sm:$0xff]
          %v802 = vld [vmem:[#allocation5 + $0x8] sm:$0xff]
          %v803 = vld [vmem:[#allocation5 + $0x10] sm:$0xff]
          %v804 = vld [vmem:[#allocation5 + $0x18] sm:$0xff]
          %v806 = vlaneseq
          %v807 = vshrl.u32 %v806, 7
          %v808 = vsub.s32 0, %v807
          %v809 = vrot.slane %v800, %v808
          %v811 = vmul.f32 %v801, %v809
          %v812 = vmul.f32 %v802, %v809
          %v813 = vmul.f32 %v803, %v809
          %v814 = vmul.f32 %v804, %v809
          %v815 = vpack.c.bf16 %v812, %v811
          %v816 = vpack.c.bf16 %v814, %v813
          %v817 = vld [vmem:[%s4] sm:$0xf]
          %v818 = vld [vmem:[%s4 + $0x4] sm:$0xf]
          %v819 = vld [vmem:[%s4 + $0x8] sm:$0xf]
          %v820 = vld [vmem:[%s4 + $0xc] sm:$0xf]
          %v825 = vunpack.c.l.b16 %v817
          %v826 = vunpack.c.l.b16 %v818
          %v827 = vunpack.c.l.b16 %v819
          %v828 = vunpack.c.l.b16 %v820
          %v829 = vpack.c.b16 %v826, %v825
          %v830 = vpack.c.b16 %v828, %v827
          %833 = vxpose.xlu0.c.b16.start [1/8] %v829, 128
          %834 = vxpose.xlu0.c.b16.cont [2/8] %v830, 128
          %835 = vxpose.xlu0.c.b16.cont [3/8] 0, 128
          %836 = vxpose.xlu0.c.b16.cont [4/8] 0, 128
          %837 = vxpose.xlu0.c.b16.cont [5/8] 0, 128
          %838 = vxpose.xlu0.c.b16.cont [6/8] 0, 128
          %839 = vxpose.xlu0.c.b16.cont [7/8] 0, 128
          %840 = vxpose.xlu0.c.b16.end [8/8] 0, 128
          %v841 = vpop.trf.xlu0
          %v842 = vpop.trf.xlu0
          %v843 = vpop.trf.xlu0
          %v844 = vpop.trf.xlu0
          %v845 = vpop.trf.xlu0
          %v846 = vpop.trf.xlu0
          %v847 = vpop.trf.xlu0
          %v848 = vpop.trf.xlu0
          %v850 = vsel %vm476, %v841, 0
          %852 = vmatprep.subr.bf16.mxu0 0
          %853 = vmatpush1.bf16.msra.mxu0 %v815
          %854 = vmatprep.subr.bf16.mxu0 0
          %855 = vmatpush1.bf16.msra.mxu0 %v816
          %856 = vmatprep.subr.bf16.mxu0 0
          %857 = vmatpush1.bf16.msra.mxu0 0
          %858 = vmatprep.subr.bf16.mxu0 0
          %859 = vmatpush1.bf16.msra.mxu0 0
          %860 = vmatprep.subr.bf16.mxu0 0
          %861 = vmatpush1.bf16.msra.mxu0 0
          %862 = vmatprep.subr.bf16.mxu0 0
          %863 = vmatpush1.bf16.msra.mxu0 0
          %864 = vmatprep.subr.bf16.mxu0 0
          %865 = vmatpush1.bf16.msra.mxu0 0
          %866 = vmatprep.subr.bf16.mxu0 0
          %867 = vmatpush1.bf16.msra.mxu0 0
          %868 = vmatprep.subr.bf16.mxu0 0
          %869 = vmatpush1.bf16.msra.mxu0 0
          %870 = vmatprep.subr.bf16.mxu0 0
          %871 = vmatpush1.bf16.msra.mxu0 0
          %872 = vmatprep.subr.bf16.mxu0 0
          %873 = vmatpush1.bf16.msra.mxu0 0
          %874 = vmatprep.subr.bf16.mxu0 0
          %875 = vmatpush1.bf16.msra.mxu0 0
          %876 = vmatprep.subr.bf16.mxu0 0
          %877 = vmatpush1.bf16.msra.mxu0 0
          %878 = vmatprep.subr.bf16.mxu0 0
          %879 = vmatpush1.bf16.msra.mxu0 0
          %880 = vmatprep.subr.bf16.mxu0 0
          %881 = vmatpush1.bf16.msra.mxu0 0
          %882 = vmatprep.subr.bf16.mxu0 0
          %883 = vmatpush1.bf16.msra.mxu0 0
          %884 = vmatprep.mubr.bf16.mxu0 0
          %885 = vmatmul.mubr.bf16.gmra.mrb[0].mxu0 %v850
          %v886 = vpop.f32.mrb[0].mxu0
          %v887 = vadd.f32 0.0, %v886
          %v888 = vpop.f32.mrb[0].mxu0
          %v889 = vpop.f32.mrb[0].mxu0
          %v890 = vpop.f32.mrb[0].mxu0
          %891 = vdwg.mxu0
          %892 = vst [vmem:[%s332] sm:$0xf] %v887
        $region56: #{tpu_custom_call.1} parent=39 // pred_fallthru
          _
        %s893 = sand.u32 %s180, 1
        %s894 = scalar_lea.sflag [#allocation8], %s893
        %s895 = sand.u32 %s180, 1
        %s896 = smul.addr %s895, 4
        %s897 = scalar_lea.vmem [#allocation11], %s896
        // Predicated region
        $region57: #{tpu_custom_call.1} parent=39 // pred_check
          %p898 = pneg %p190
        $region58: #{tpu_custom_call.1} parent=39 // pred_check_branch
          %900 = sbr.rel (%p898) target = $region60
        $region59: #{tpu_custom_call.1} parent=39 // pred_region
          %s902 = ssub.s32 64, 64
          %903 = vsyncadd %s894, %s902
          %s904 = smul.addr %s30, 2
          %s905 = sadd.s32 %s31, %s904
          %s906 = smul.addr %s905, 64
          %s907 = scalar_lea.hbm %s5, %s906
          %s909 = sshll.u32 %s897, 4
          %s910 = int_to_ptr.vmem [resolvable:$true] %s909
          %912 = dma.vmem_to_hbm [thread:$0]  %s910, 64, %s907, %s894
        $region60: #{tpu_custom_call.1} parent=39 // pred_fallthru
          _
      $region40: #{tpu_custom_call.1} parent=5 // pred_fallthru
        _
      %p913 = scmp.le.s32.totalorder 2, %s20
      // Predicated region
      $region61: #{tpu_custom_call.1} parent=5 // pred_check
        %p914 = pneg %p913
      $region62: #{tpu_custom_call.1} parent=5 // pred_check_branch
        %916 = sbr.rel (%p914) target = $region64
      $region63: #{tpu_custom_call.1} parent=5 // pred_region
        %s917 = ssub.s32 %s20, 2
        // Predicated region
        $region65: #{tpu_custom_call.1} parent=63 // pred_check
          %p918 = pneg %p196
        $region66: #{tpu_custom_call.1} parent=63 // pred_check_branch
          %920 = sbr.rel (%p918) target = $region68
        $region67: #{tpu_custom_call.1} parent=63 // pred_region
          %s921 = sand.u32 %s181, 1
          %s922 = scalar_lea.sflag [#allocation8], %s921
          %s923 = sand.u32 %s181, 1
          %s924 = smul.addr %s923, 4
          %s925 = scalar_lea.vmem [#allocation11], %s924
          %926 = dma.done %s922, 64
        $region68: #{tpu_custom_call.1} parent=63 // pred_fallthru
          _
      $region64: #{tpu_custom_call.1} parent=5 // pred_fallthru
        _
    $region6: #{tpu_custom_call.1} parent=1 // loop_footer
      %s24 = sadd.s32 1, %s20
    $region7: #{tpu_custom_call.1} parent=1 // loop_footer_branch
      %19 = sbr.rel target = $region3
    $region8: #{tpu_custom_call.1} parent=1 // loop_exit
      _
    %927 = vsyncpa [#allocation7], 1
    %s928 = scalar_lea.sflag [#allocation7], 1
    %929 = vsyncpa %s928, 1
    %930 = vsyncpa [#allocation10], 1
    %s931 = scalar_lea.sflag [#allocation10], 1
    %932 = vsyncpa %s931, 1
    %933 = vsyncpa [#allocation8], 1
    %s934 = scalar_lea.sflag [#allocation8], 1
    %935 = vsyncpa %s934, 1

</llo_original>
